<compile_context>
chip_gen: v7x
topology: tpu7x:2x2x1
jax: 0.10.0
libtpu: 0.0.40
codegen_flags: <defaults>
</compile_context>

<pallas_src>
import jax
import jax.numpy as jnp
from jax.experimental import pallas as pl
from jax.experimental.pallas import tpu as pltpu


# ----------------------------------------------------------------------------
# Quaternion (Hamilton-product) weight assembly — weight-side glue only.
# ----------------------------------------------------------------------------
def _hamilton_weight(r_w, i_w, j_w, k_w):
    """Dense (Cout, Cin) quaternion-conv weight from the 4 sub-weights.

    Parcollet-style block structure:
        W = [[ r -i -j -k ]
             [ i  r -k  j ]
             [ j  k  r -i ]
             [ k -j  i  r ]]
    block rows = output (r,i,j,k) parts, block cols = input (r,i,j,k) parts.
    """
    # TODO(synk): sign/layout convention matches the common Parcollet
    # QuaternionConv2d; validate once against the exact Network/ implementation
    # (requires torch) if bitwise parity with that repo is needed.
    co4, ci4 = r_w.shape[0], r_w.shape[1]
    r, i, j, k = (w.reshape(co4, ci4) for w in (r_w, i_w, j_w, k_w))
    return jnp.concatenate(
        [
            jnp.concatenate([r, -i, -j, -k], axis=1),
            jnp.concatenate([i,  r, -k,  j], axis=1),
            jnp.concatenate([j,  k,  r, -i], axis=1),
            jnp.concatenate([k, -j,  i,  r], axis=1),
        ],
        axis=0,
    )


# ----------------------------------------------------------------------------
# VMEM budgeting / spatial-tile selection.
# ----------------------------------------------------------------------------
def _vmem_limit_bytes():
    """Per-generation scoped-VMEM limit: 96 MiB on 128-MiB parts, 48 MiB on v7x."""
    cap = 64 << 20  # conservative default = smallest (v7x) physical VMEM
    try:
        info = pltpu.get_tpu_info()
        cap = int(getattr(info, "vmem_capacity_bytes", cap))
    except Exception:
        pass
    return (96 << 20) if cap >= (128 << 20) else (48 << 20)


def _pick_spatial_tile(hw, cin, cout, x_bytes, out_bytes, vmem_budget, batch):
    """Largest lane-dense tile (multiple of 128) fitting the VMEM budget.

    Per lane of tile we pay (double-buffered in + out, bf16 cast temp, f32 acc):
        2*(cin*x_bytes + cout*out_bytes) + cin*2 + cout*4   bytes.
    Also guarantees >= 2 total grid steps when possible (v7x megacore).
    """
    if hw <= 128:
        return hw                                   # full-extent block (allowed)
    bytes_per_lane = 2 * (cin * x_bytes + cout * out_bytes) + cin * 2 + cout * 4
    t = (vmem_budget // max(bytes_per_lane, 1)) // 128 * 128
    t = max(128, min(t, 64 * 1024))                 # sane upper cap
    hw_padded = ((hw + 127) // 128) * 128
    t = min(t, hw_padded)
    # Guarantee at least 2 grid steps so both v7x TensorCores get work.
    while t > 128 and batch * pl.cdiv(hw, t) < 2:
        t = max(128, ((t // 2) + 127) // 128 * 128)
    return t


# ----------------------------------------------------------------------------
# Pallas kernel: quaternion 1x1 conv = (Cout,Cin) @ (Cin,T) matmul, bias fused.
# ----------------------------------------------------------------------------
def _qconv1x1_kernel(x_ref, w_ref, b_ref, o_ref):
    # x_ref: (Cin, T) native dtype | w_ref: (Cout, Cin) bf16 | b_ref: (Cout, 1) f32
    x_bf = x_ref[...].astype(jnp.bfloat16)                       # in-VMEM cast (VPU)
    y = jnp.dot(w_ref[...], x_bf,
                preferred_element_type=jnp.float32)              # MXU, f32 accumulate
    o_ref[...] = (y + b_ref[...]).astype(o_ref.dtype)            # fused bias epilogue


def quaternion_conv1x1_pallas(x, r_w, i_w, j_w, k_w, bias, out_dtype=None):
    """QuaternionConv2d(kernel_size=1, stride=1, padding=0) forward."""
    B, Cin, H, W = x.shape
    co4, ci4 = r_w.shape[0], r_w.shape[1]
    Cout = 4 * co4
    assert Cin == 4 * ci4, "quaternion conv needs in_channels divisible by 4"
    HW = H * W
    out_dtype = x.dtype if out_dtype is None else jnp.dtype(out_dtype)

    w_quat = _hamilton_weight(r_w, i_w, j_w, k_w).astype(jnp.bfloat16)  # (Cout, Cin)
    x3 = x.reshape(B, Cin, HW)                       # free reshape, NATIVE dtype
    b2 = bias.reshape(Cout, 1).astype(jnp.float32)

    vmem_limit = _vmem_limit_bytes()
    x_bytes = jnp.dtype(x.dtype).itemsize
    o_bytes = jnp.dtype(out_dtype).itemsize
    # Leave a few MiB of headroom for the (tiny) weight/bias buffers + compiler scratch.
    tile_budget = max(vmem_limit - (4 << 20), 1 << 20)
    T = _pick_spatial_tile(HW, Cin, Cout, x_bytes, o_bytes, tile_budget, B)

    grid = (B, pl.cdiv(HW, T))                       # ragged last block is masked

    flops = 2 * B * Cout * Cin * HW
    bytes_accessed = (B * Cin * HW * x_bytes
                      + B * Cout * HW * o_bytes
                      + Cout * Cin * 2 + Cout * 4)

    out = pl.pallas_call(
        _qconv1x1_kernel,
        out_shape=jax.ShapeDtypeStruct((B, Cout, HW), out_dtype),
        grid=grid,
        in_specs=[
            pl.BlockSpec((None, Cin, T), lambda b, s: (b, 0, s)),   # activations
            pl.BlockSpec((Cout, Cin),    lambda b, s: (0, 0)),      # Hamilton weight
            pl.BlockSpec((Cout, 1),      lambda b, s: (0, 0)),      # bias
        ],
        out_specs=pl.BlockSpec((None, Cout, T), lambda b, s: (b, 0, s)),
        compiler_params=pltpu.CompilerParams(
            dimension_semantics=("parallel", "parallel"),
            vmem_limit_bytes=vmem_limit),
        cost_estimate=pl.CostEstimate(flops=flops, transcendentals=0,
                                      bytes_accessed=bytes_accessed),
    )(x3, w_quat, b2)
    return out.reshape(B, Cout, H, W)


def output_layers_q_forward(x, params, out_dtype=None):
    """OutputLayers_Q.forward: Sequential(QuaternionConv2d(k=1, s=1, p=0))."""
    return quaternion_conv1x1_pallas(x, params["r_w"], params["i_w"],
                                     params["j_w"], params["k_w"], params["bias"],
                                     out_dtype=out_dtype)


# ----------------------------------------------------------------------------
# Pure-JAX f32 reference (sanity check of the fused kernel).
# ----------------------------------------------------------------------------
def _reference(x, params):
    wq = _hamilton_weight(params["r_w"], params["i_w"], params["j_w"],
                          params["k_w"]).astype(jnp.float32)
    return (jnp.einsum("oc,bchw->bohw", wq, x.astype(jnp.float32))
            + params["bias"][None, :, None, None])


if __name__ == "__main__":
    # Small shapes consistent with the module: quaternion conv needs channels % 4 == 0.
    B, Cin, Cout, H, W = 2, 8, 8, 16, 16

    key = jax.random.PRNGKey(0)
    kx, kr, ki, kj, kk, kb = jax.random.split(key, 6)
    # TODO(synk): the reference QuaternionConv2d uses a chi-distributed quaternion
    # weight initializer; initialization is not part of the forward semantics, so
    # deterministic Gaussians are used for this synthetic instantiation.
    wshape = (Cout // 4, Cin // 4, 1, 1)
    params = {
        "r_w": 0.1 * jax.random.normal(kr, wshape, jnp.float32),
        "i_w": 0.1 * jax.random.normal(ki, wshape, jnp.float32),
        "j_w": 0.1 * jax.random.normal(kj, wshape, jnp.float32),
        "k_w": 0.1 * jax.random.normal(kk, wshape, jnp.float32),
        "bias": 0.01 * jax.random.normal(kb, (Cout,), jnp.float32),
    }
    x = jax.random.normal(kx, (B, Cin, H, W), jnp.float32)

    fwd = jax.jit(output_layers_q_forward)
    out = fwd(x, params)
    jax.block_until_ready(out)

    assert out.shape == (B, Cout, H, W) and out.dtype == x.dtype
    ref = _reference(x, params)
    # bf16 MXU operands with f32 accumulation -> loose but meaningful tolerance.
    assert bool(jnp.allclose(out, ref, rtol=2e-2, atol=2e-2)), "mismatch vs f32 reference"
    print("KERNEL_OK")
</pallas_src>

<mosaic_0001>
module attributes {stable_mosaic.version = 11 : i64} {
  func.func @_qconv1x1_kernel(%arg0: i32, %arg1: i32, %arg2: memref<1x8x256xf32, #tpu.memory_space<vmem>>, %arg3: memref<8x8xbf16, #tpu.memory_space<vmem>>, %arg4: memref<8x1xf32, #tpu.memory_space<vmem>>, %arg5: memref<1x8x256xf32, #tpu.memory_space<vmem>>) attributes {dimension_semantics = [#tpu.dimension_semantics<parallel>, #tpu.dimension_semantics<parallel>], iteration_bounds = array<i64: 2, 1>, scalar_prefetch = 0 : i64, scratch_operands = 0 : i64, tpu.core_type = #tpu.core_type<tc>, window_params = [{transform_indices = @transform_0, window_bounds = array<i64: 1, 8, 256>}, {pipeline_mode = #tpu.pipeline_mode<synchronous>, transform_indices = @transform_1, window_bounds = array<i64: 8, 8>}, {pipeline_mode = #tpu.pipeline_mode<synchronous>, transform_indices = @transform_2, window_bounds = array<i64: 8, 1>}, {transform_indices = @transform_3, window_bounds = array<i64: 1, 8, 256>}]} {
    %c0 = arith.constant 0 : index
    %c0_0 = arith.constant 0 : index
    %c0_1 = arith.constant 0 : index
    %0 = vector.load %arg2[%c0, %c0_0, %c0_1] : memref<1x8x256xf32, #tpu.memory_space<vmem>>, vector<1x8x256xf32>
    %1 = vector.shape_cast %0 : vector<1x8x256xf32> to vector<8x256xf32>
    %2 = arith.truncf %1 : vector<8x256xf32> to vector<8x256xbf16>
    %c0_2 = arith.constant 0 : index
    %c0_3 = arith.constant 0 : index
    %3 = vector.load %arg3[%c0_2, %c0_3] : memref<8x8xbf16, #tpu.memory_space<vmem>>, vector<8x8xbf16>
    %cst = arith.constant dense<0.000000e+00> : vector<8x256xf32>
    %4 = tpu.matmul %3, %2, %cst {dimension_numbers = #tpu.dot_dimension_numbers<[1], [0], [0], [1], [0, 0, 1, 1], [], []>} : vector<8x8xbf16>, vector<8x256xbf16>, vector<8x256xf32> -> vector<8x256xf32>
    %c0_4 = arith.constant 0 : index
    %c0_5 = arith.constant 0 : index
    %5 = vector.load %arg4[%c0_4, %c0_5] : memref<8x1xf32, #tpu.memory_space<vmem>>, vector<8x1xf32>
    %6 = vector.broadcast %5 : vector<8x1xf32> to vector<8x256xf32>
    %7 = arith.addf %4, %6 : vector<8x256xf32>
    %c0_6 = arith.constant 0 : index
    %c0_7 = arith.constant 0 : index
    %c0_8 = arith.constant 0 : index
    %8 = vector.load %arg5[%c0_6, %c0_7, %c0_8] : memref<1x8x256xf32, #tpu.memory_space<vmem>>, vector<1x8x256xf32>
    %9 = vector.shape_cast %8 : vector<1x8x256xf32> to vector<8x256xf32>
    %10 = vector.shape_cast %7 : vector<8x256xf32> to vector<1x8x256xf32>
    tpu.vector_store %arg5[%c0_6, %c0_7, %c0_8], %10 {strides = array<i32>} : memref<1x8x256xf32, #tpu.memory_space<vmem>>, vector<1x8x256xf32>,
    return
  }
  func.func @transform_0(%arg0: i32, %arg1: i32) -> (i32, i32, i32) {
    %c0_i32 = arith.constant 0 : i32
    %c0_i32_0 = arith.constant 0 : i32
    return %arg0, %c0_i32, %arg1 : i32, i32, i32
  }
  func.func @transform_1(%arg0: i32, %arg1: i32) -> (i32, i32) {
    %c0_i32 = arith.constant 0 : i32
    %c0_i32_0 = arith.constant 0 : i32
    %c0_i32_1 = arith.constant 0 : i32
    return %c0_i32, %c0_i32_0 : i32, i32
  }
  func.func @transform_2(%arg0: i32, %arg1: i32) -> (i32, i32) {
    %c0_i32 = arith.constant 0 : i32
    %c0_i32_0 = arith.constant 0 : i32
    %c0_i32_1 = arith.constant 0 : i32
    return %c0_i32, %c0_i32_0 : i32, i32
  }
  func.func @transform_3(%arg0: i32, %arg1: i32) -> (i32, i32, i32) {
    %c0_i32 = arith.constant 0 : i32
    %c0_i32_0 = arith.constant 0 : i32
    return %arg0, %c0_i32, %arg1 : i32, i32, i32
  }
}

</mosaic_0001>

<llo_original>
// kernel: output_layers_q_forward.1
$region0: #{output_layers_q_forward.1}
  #allocation0 [shape = 'u32[]', space=smem, size = 0x4, offset = 0x4, fixed_abs, tag = 'smem constant byte address 0x4 - core index']
  #allocation1 [shape = 'u32[144,128]{1,0:T(1,128)}', space=vmem, size = 0x12000, scoped, tag = 'internal scratch']
  %s0 = inlined_call_operand.vmem [shape: f32[2,8,256], index: 0, kind: input, shape index: {}]
  %s1 = inlined_call_operand.vmem [shape: bf16[8,8], index: 1, kind: input, shape index: {}]
  %s2 = inlined_call_operand.vmem [shape: f32[8,1], index: 2, kind: input, shape index: {}]
  %s3 = inlined_call_operand.vmem [shape: f32[2,8,256], index: 3, kind: output, shape index: {}]
  %s4 = sld [smem:[#allocation0]]
  $region45: #{output_layers_q_forward.1} parent=0
    _
  %s6 = ssub.s32 1, %s4
  %s7 = scalar_select 0, %s6, %s4
  loop: start=0, step=1, limit=4
  $region2: #{output_layers_q_forward.1} parent=0 // loop_pre_header
    _
  $region3: #{output_layers_q_forward.1} parent=0 // loop_header
    %s9 = sphi 0, %s13
    %p10 = scmp.ge.s32.totalorder %s9, 4
    %s16 = sphi 0, %s28
    %s17 = sphi 0, %s24
    %s18 = sphi 0, %s16
    %s19 = sphi 0, %s17
    %s20 = sphi 0, %s18
    %s21 = sphi 0, %s19
    %s33 = sphi 0, %s35
    %s36 = sphi 0, %s33
    %s37 = sphi 0, %s36
    %s53 = sphi 0, %s37
    %s57 = sphi 0, %s57
    %s59 = sphi 0, %s57
    %s60 = sphi 0, %s59
    %s74 = sphi 0, %s60
    %s78 = sphi 0, %s78
    %s80 = sphi 0, %s78
    %s81 = sphi 0, %s80
    %s95 = sphi 0, %s81
    %s103 = sphi 0, %s105
    %s106 = sphi 0, %s103
    %s107 = sphi 0, %s106
    %s123 = sphi 0, %s107
  $region4: #{output_layers_q_forward.1} parent=0 // loop_header_branch
    %12 = sbr.rel (%p10) target = $region8
  $region5: #{output_layers_q_forward.1} parent=0 // loop_body
    %s14 = ssub.s32 %s9, 1
    %s15 = ssub.s32 %s9, 2
    %s22 = sadd.s32 1, %s17
    %p23 = scmp.ge.s32.totalorder %s22, 1
    %s24 = scalar_select %p23, 0, %s22
    %s25 = sadd.s32 1, %s16
    %s26 = scalar_select %p23, %s25, %s16
    %p27 = scmp.ge.s32.totalorder %s26, 2
    %s28 = scalar_select %p27, 0, %s26
    %s29 = ssub.s32 %s16, %s28
    %s30 = ssub.s32 %s17, %s24
    %s31 = sor.u32 %s29, %s30
    %p32 = scmp.eq.s32.totalorder %s31, 0
    %s34 = sadd.s32 %s33, 1
    %s35 = scalar_select %p32, %s33, %s34
    %p38 = pneg %p32
    %p39 = scmp.eq.s32.totalorder %s9, 1
    %p40 = por %p38, %p39
    %p41 = scmp.ne.s32.totalorder %s33, %s36
    %p42 = scmp.eq.s32.totalorder %s9, 0
    %p43 = por %p41, %p42
    %p44 = scmp.ne.s32.totalorder %s33, %s36
    %p45 = scmp.eq.s32.totalorder %s14, 1
    %p46 = por %p44, %p45
    %p47 = scmp.ne.s32.totalorder %s36, %s37
    %p48 = scmp.eq.s32.totalorder %s14, 0
    %p49 = por %p47, %p48
    %p50 = scmp.ne.s32.totalorder %s36, %s37
    %p51 = scmp.eq.s32.totalorder %s15, 1
    %p52 = por %p50, %p51
    %p54 = scmp.ne.s32.totalorder %s37, %s53
    %p55 = scmp.eq.s32.totalorder %s15, 0
    %p56 = por %p54, %p55
    %s58 = sadd.s32 %s57, 1
    %p61 = scmp.eq.s32.totalorder %s9, 1
    %p62 = scmp.ne.s32.totalorder %s57, %s59
    %p63 = scmp.eq.s32.totalorder %s9, 0
    %p64 = por %p62, %p63
    %p65 = scmp.ne.s32.totalorder %s57, %s59
    %p66 = scmp.eq.s32.totalorder %s14, 1
    %p67 = por %p65, %p66
    %p68 = scmp.ne.s32.totalorder %s59, %s60
    %p69 = scmp.eq.s32.totalorder %s14, 0
    %p70 = por %p68, %p69
    %p71 = scmp.ne.s32.totalorder %s59, %s60
    %p72 = scmp.eq.s32.totalorder %s15, 1
    %p73 = por %p71, %p72
    %p75 = scmp.ne.s32.totalorder %s60, %s74
    %p76 = scmp.eq.s32.totalorder %s15, 0
    %p77 = por %p75, %p76
    %s79 = sadd.s32 %s78, 1
    %p82 = scmp.eq.s32.totalorder %s9, 1
    %p83 = scmp.ne.s32.totalorder %s78, %s80
    %p84 = scmp.eq.s32.totalorder %s9, 0
    %p85 = por %p83, %p84
    %p86 = scmp.ne.s32.totalorder %s78, %s80
    %p87 = scmp.eq.s32.totalorder %s14, 1
    %p88 = por %p86, %p87
    %p89 = scmp.ne.s32.totalorder %s80, %s81
    %p90 = scmp.eq.s32.totalorder %s14, 0
    %p91 = por %p89, %p90
    %p92 = scmp.ne.s32.totalorder %s80, %s81
    %p93 = scmp.eq.s32.totalorder %s15, 1
    %p94 = por %p92, %p93
    %p96 = scmp.ne.s32.totalorder %s81, %s95
    %p97 = scmp.eq.s32.totalorder %s15, 0
    %p98 = por %p96, %p97
    %s99 = ssub.s32 %s16, %s28
    %s100 = ssub.s32 %s17, %s24
    %s101 = sor.u32 %s99, %s100
    %p102 = scmp.eq.s32.totalorder %s101, 0
    %s104 = sadd.s32 %s103, 1
    %s105 = scalar_select %p102, %s103, %s104
    %p108 = pneg %p102
    %p109 = scmp.eq.s32.totalorder %s9, 1
    %p110 = por %p108, %p109
    %p111 = scmp.ne.s32.totalorder %s103, %s106
    %p112 = scmp.eq.s32.totalorder %s9, 0
    %p113 = por %p111, %p112
    %p114 = scmp.ne.s32.totalorder %s103, %s106
    %p115 = scmp.eq.s32.totalorder %s14, 1
    %p116 = por %p114, %p115
    %p117 = scmp.ne.s32.totalorder %s106, %s107
    %p118 = scmp.eq.s32.totalorder %s14, 0
    %p119 = por %p117, %p118
    %p120 = scmp.ne.s32.totalorder %s106, %s107
    %p121 = scmp.eq.s32.totalorder %s15, 1
    %p122 = por %p120, %p121
    %p124 = scmp.ne.s32.totalorder %s107, %s123
    %p125 = scmp.eq.s32.totalorder %s15, 0
    %p126 = por %p124, %p125
    %p127 = scmp.le.s32.totalorder 1, %s9
    %p128 = scmp.lt.s32.totalorder %s9, 3
    %p129 = pnand %p127, %p128
    %p130 = pneg %p129
    // Predicated region
    $region9: #{output_layers_q_forward.1} parent=5 // pred_check
      _
    $region10: #{output_layers_q_forward.1} parent=5 // pred_check_branch
      %132 = sbr.rel (%p129) target = $region12
    $region11: #{output_layers_q_forward.1} parent=5 // pred_region
      %s133 = ssub.s32 %s9, 1
      // Predicated region
      $region13: #{output_layers_q_forward.1} parent=11 // pred_check
        %p134 = pneg %p70
      $region14: #{output_layers_q_forward.1} parent=11 // pred_check_branch
        %136 = sbr.rel (%p134) target = $region16
      $region15: #{output_layers_q_forward.1} parent=11 // pred_region
        _
      $region16: #{output_layers_q_forward.1} parent=11 // pred_fallthru
        _
      // Predicated region
      $region17: #{output_layers_q_forward.1} parent=11 // pred_check
        %p137 = pneg %p91
      $region18: #{output_layers_q_forward.1} parent=11 // pred_check_branch
        %139 = sbr.rel (%p137) target = $region20
      $region19: #{output_layers_q_forward.1} parent=11 // pred_region
        _
      $region20: #{output_layers_q_forward.1} parent=11 // pred_fallthru
        _
    $region12: #{output_layers_q_forward.1} parent=5 // pred_fallthru
      _
    %p140 = scmp.lt.s32.totalorder %s9, 2
    // Predicated region
    $region21: #{output_layers_q_forward.1} parent=5 // pred_check
      %p141 = pneg %p140
    $region22: #{output_layers_q_forward.1} parent=5 // pred_check_branch
      %143 = sbr.rel (%p141) target = $region24
    $region23: #{output_layers_q_forward.1} parent=5 // pred_region
      // Predicated region
      $region25: #{output_layers_q_forward.1} parent=23 // pred_check
        %p144 = pneg %p43
      $region26: #{output_layers_q_forward.1} parent=23 // pred_check_branch
        %146 = sbr.rel (%p144) target = $region28
      $region27: #{output_layers_q_forward.1} parent=23 // pred_region
        %s147 = smul.u32 2, %s17
        %p148 = scmp.lt.s32.totalorder %s16, 1
        %s149 = scalar_select %p148, %s16, 1
        %p150 = scmp.lt.s32.totalorder %s147, 1
        %s151 = scalar_select %p150, %s147, 1
        %s152 = smul.addr %s149, 2
        %s153 = sadd.s32 %s151, %s152
        %s154 = smul.addr %s153, 8
        %s155 = scalar_lea.vmem %s0, %s154
        %s156 = smul.u32 2, %s17
      $region28: #{output_layers_q_forward.1} parent=23 // pred_fallthru
        _
    $region24: #{output_layers_q_forward.1} parent=5 // pred_fallthru
      _
    %p157 = scmp.le.s32.totalorder 1, %s9
    %p158 = scmp.lt.s32.totalorder %s9, 3
    %p159 = pnand %p157, %p158
    %p160 = pneg %p159
    // Predicated region
    $region29: #{output_layers_q_forward.1} parent=5 // pred_check
      _
    $region30: #{output_layers_q_forward.1} parent=5 // pred_check_branch
      %162 = sbr.rel (%p159) target = $region32
    $region31: #{output_layers_q_forward.1} parent=5 // pred_region
      %s163 = ssub.s32 %s9, 1
      %s164 = smul.u32 2, %s19
      %p165 = scmp.lt.s32.totalorder %s18, 1
      %s166 = scalar_select %p165, %s18, 1
      %p167 = scmp.lt.s32.totalorder %s164, 1
      %s168 = scalar_select %p167, %s164, 1
      %s169 = smul.addr %s166, 2
      %s170 = sadd.s32 %s168, %s169
      %s171 = smul.addr %s170, 8
      %s172 = scalar_lea.vmem %s0, %s171
      %p173 = pneg %p49
      %p174 = pneg %p46
      %p175 = pneg %p70
      %p176 = pneg %p67
      %p177 = pneg %p91
      %p178 = pneg %p88
      %p179 = pneg %p119
      %p180 = pneg %p116
      %s181 = smul.u32 2, %s19
      %p182 = scmp.lt.s32.totalorder %s18, 1
      %s183 = scalar_select %p182, %s18, 1
      %p184 = scmp.lt.s32.totalorder %s181, 1
      %s185 = scalar_select %p184, %s181, 1
      %s186 = smul.addr %s183, 2
      %s187 = sadd.s32 %s185, %s186
      %s188 = smul.addr %s187, 8
      %s189 = scalar_lea.vmem %s3, %s188
      %s190 = smul.u32 2, %s19
      %p191 = scmp.lt.s32.totalorder %s18, 1
      %s192 = scalar_select %p191, %s18, 1
      %p193 = scmp.lt.s32.totalorder %s190, 1
      %s194 = scalar_select %p193, %s190, 1
      %s195 = smul.addr %s192, 2
      %s196 = sadd.s32 %s194, %s195
      %s197 = smul.addr %s196, 8
      %s198 = scalar_lea.vmem %s0, %s197
      %s199 = smul.u32 2, %s19
      %s200 = smul.u32 2, %s19
      %p201 = scmp.lt.s32.totalorder %s18, 1
      %s202 = scalar_select %p201, %s18, 1
      %p203 = scmp.lt.s32.totalorder %s200, 1
      %s204 = scalar_select %p203, %s200, 1
      %s205 = smul.addr %s202, 2
      %s206 = sadd.s32 %s204, %s205
      %s207 = smul.addr %s206, 8
      %s208 = scalar_lea.vmem %s3, %s207
      %s209 = smul.u32 2, %s19
      %v211 = vld [vmem:[%s198] sm:$0xff]
      %v212 = vld [vmem:[%s198 + $0x8] sm:$0xff]
      %v213 = vpack.c.bf16 %v211, %v211
      %v214 = vpack.c.bf16 %v212, %v212
      %v215 = vld [vmem:[%s1] sm:$0xf]
      %v216 = vld [vmem:[%s2] sm:$0xff]
      %218 = vset.pattern.permute.xlu0 0
      %219 = vperm.xlu0 %218, %v216
      %v220 = vpop.permute.xlu0 %219
      %vm222 = vcmask 64512
      %v224 = vsel %vm222, %v215, 0
      %vm226 = vcmask 1043456
      %v228 = vsel %vm226, %v213, 0
      %v231 = vsel %vm226, %v214, 0
      %233 = vmatprep.subr.bf16.mxu0 %v231
      %234 = vmatpush1.bf16.msra.mxu0 %v228
      %235 = vmatprep.subr.bf16.mxu0 0
      %236 = vmatpush1.bf16.msra.mxu0 0
      %237 = vmatprep.subr.bf16.mxu0 0
      %238 = vmatpush1.bf16.msra.mxu0 0
      %239 = vmatprep.subr.bf16.mxu0 0
      %240 = vmatpush1.bf16.msra.mxu0 0
      %241 = vmatprep.subr.bf16.mxu0 0
      %242 = vmatpush1.bf16.msra.mxu0 0
      %243 = vmatprep.subr.bf16.mxu0 0
      %244 = vmatpush1.bf16.msra.mxu0 0
      %245 = vmatprep.subr.bf16.mxu0 0
      %246 = vmatpush1.bf16.msra.mxu0 0
      %247 = vmatprep.subr.bf16.mxu0 0
      %248 = vmatpush1.bf16.msra.mxu0 0
      %249 = vmatprep.subr.bf16.mxu0 0
      %250 = vmatpush1.bf16.msra.mxu0 0
      %251 = vmatprep.subr.bf16.mxu0 0
      %252 = vmatpush1.bf16.msra.mxu0 0
      %253 = vmatprep.subr.bf16.mxu0 0
      %254 = vmatpush1.bf16.msra.mxu0 0
      %255 = vmatprep.subr.bf16.mxu0 0
      %256 = vmatpush1.bf16.msra.mxu0 0
      %257 = vmatprep.subr.bf16.mxu0 0
      %258 = vmatpush1.bf16.msra.mxu0 0
      %259 = vmatprep.subr.bf16.mxu0 0
      %260 = vmatpush1.bf16.msra.mxu0 0
      %261 = vmatprep.subr.bf16.mxu0 0
      %262 = vmatpush1.bf16.msra.mxu0 0
      %263 = vmatprep.subr.bf16.mxu0 0
      %264 = vmatpush1.bf16.msra.mxu0 0
      %265 = vmatprep.mubr.bf16.mxu0 0
      %266 = vmatmul.mubr.bf16.gmra.mrb[0].mxu0 %v224
      %v267 = vpop.f32.mrb[0].mxu0
      %v268 = vadd.f32 %v220, %v267
      %v269 = vpop.f32.mrb[0].mxu0
      %v270 = vadd.f32 %v220, %v269
      %v271 = vpop.f32.mrb[0].mxu0
      %v272 = vpop.f32.mrb[0].mxu0
      %273 = vdwg.mxu0
      %274 = vst [vmem:[%s208] sm:$0xff] %v268
      %275 = vst [vmem:[%s208 + $0x8] sm:$0xff] %v270
      %s276 = smul.u32 2, %s19
      %p277 = scmp.lt.s32.totalorder %s18, 1
      %s278 = scalar_select %p277, %s18, 1
      %p279 = scmp.lt.s32.totalorder %s276, 1
      %s280 = scalar_select %p279, %s276, 1
      %s281 = smul.addr %s278, 2
      %s282 = sadd.s32 %s280, %s281
      %s283 = smul.addr %s282, 8
      %s284 = scalar_lea.vmem %s3, %s283
      // Predicated region
      $region33: #{output_layers_q_forward.1} parent=31 // pred_check
        %p285 = pneg %p116
      $region34: #{output_layers_q_forward.1} parent=31 // pred_check_branch
        %287 = sbr.rel (%p285) target = $region36
      $region35: #{output_layers_q_forward.1} parent=31 // pred_region
        %s288 = smul.u32 2, %s19
      $region36: #{output_layers_q_forward.1} parent=31 // pred_fallthru
        _
    $region32: #{output_layers_q_forward.1} parent=5 // pred_fallthru
      _
    %p289 = scmp.le.s32.totalorder 2, %s9
    // Predicated region
    $region37: #{output_layers_q_forward.1} parent=5 // pred_check
      %p290 = pneg %p289
    $region38: #{output_layers_q_forward.1} parent=5 // pred_check_branch
      %292 = sbr.rel (%p290) target = $region40
    $region39: #{output_layers_q_forward.1} parent=5 // pred_region
      %s293 = ssub.s32 %s9, 2
      // Predicated region
      $region41: #{output_layers_q_forward.1} parent=39 // pred_check
        %p294 = pneg %p122
      $region42: #{output_layers_q_forward.1} parent=39 // pred_check_branch
        %296 = sbr.rel (%p294) target = $region44
      $region43: #{output_layers_q_forward.1} parent=39 // pred_region
        %s297 = smul.u32 2, %s21
        %p298 = scmp.lt.s32.totalorder %s20, 1
        %s299 = scalar_select %p298, %s20, 1
        %p300 = scmp.lt.s32.totalorder %s297, 1
        %s301 = scalar_select %p300, %s297, 1
        %s302 = smul.addr %s299, 2
        %s303 = sadd.s32 %s301, %s302
        %s304 = smul.addr %s303, 8
        %s305 = scalar_lea.vmem %s3, %s304
      $region44: #{output_layers_q_forward.1} parent=39 // pred_fallthru
        _
    $region40: #{output_layers_q_forward.1} parent=5 // pred_fallthru
      _
  $region6: #{output_layers_q_forward.1} parent=0 // loop_footer
    %s13 = sadd.s32 1, %s9
  $region7: #{output_layers_q_forward.1} parent=0 // loop_footer_branch
    %8 = sbr.rel target = $region3
  $region8: #{output_layers_q_forward.1} parent=0 // loop_exit
    _

</llo_original>
